<compile_context>
chip_gen: v5e
topology: v5e:2x2
jax: 0.10.0
libtpu: 0.0.40
codegen_flags: <defaults>
</compile_context>

<pallas_src>
import functools

import jax
import jax.numpy as jnp
from jax import lax
from jax.experimental import pallas as pl
from jax.experimental.pallas import tpu as pltpu

LANES = 128


def _pow_gamma(base, gamma):
    """(1-pt)**gamma. Specialize small integer gamma to VPU multiplies
    (jnp.power with a float exponent costs 2 extra EUP transcendentals/elem)."""
    g = float(gamma)
    if g == int(g) and 0 <= int(g) <= 8:
        gi = int(g)
        if gi == 0:
            return jnp.ones_like(base)
        r = base
        for _ in range(gi - 1):
            r = r * base
        return r
    return jnp.power(base, gamma)


def _focal_elementwise(x, t, alpha, gamma, logits):
    """Focal-loss value per element (PyTorch BCE semantics, incl. -100 log clamp)."""
    if logits:
        # F.binary_cross_entropy_with_logits (numerically stable form)
        bce = jnp.maximum(x, 0.0) - x * t + jnp.log1p(jnp.exp(-jnp.abs(x)))
    else:
        # F.binary_cross_entropy clamps log terms at -100
        bce = -(t * jnp.maximum(jnp.log(x), -100.0)
                + (1.0 - t) * jnp.maximum(jnp.log1p(-x), -100.0))
    # pt = exp(-bce) kept general (supports soft targets), matching the module.
    pt = jnp.exp(-bce)
    return alpha * _pow_gamma(1.0 - pt, gamma) * bce


def _reduce_kernel(x_ref, t_ref, o_ref, sum_acc, cnt_acc, *,
                   alpha, gamma, logits, ignored_label_idx, n_valid, tm,
                   has_tail, use_ignore):
    i = pl.program_id(0)
    last = pl.num_programs(0) - 1

    @pl.when(i == 0)
    def _():
        sum_acc[...] = jnp.zeros_like(sum_acc)
        cnt_acc[...] = jnp.zeros_like(cnt_acc)

    x = x_ref[...].astype(jnp.float32)
    t = t_ref[...].astype(jnp.float32)
    fl = _focal_elementwise(x, t, alpha, gamma, logits)

    def _pad_mask():
        row = lax.broadcasted_iota(jnp.int32, (tm, LANES), 0)
        col = lax.broadcasted_iota(jnp.int32, (tm, LANES), 1)
        idx = (i * tm + row) * LANES + col
        return (idx < n_valid).astype(jnp.float32)

    if use_ignore:
        ign = (t != jnp.float32(ignored_label_idx)).astype(jnp.float32)
        if has_tail:
            @pl.when(i != last)
            def _():
                sum_acc[...] += jnp.sum(fl * ign, axis=0, keepdims=True)
                cnt_acc[...] += jnp.sum(ign, axis=0, keepdims=True)

            @pl.when(i == last)
            def _():
                m = ign * _pad_mask()
                sum_acc[...] += jnp.sum(fl * m, axis=0, keepdims=True)
                cnt_acc[...] += jnp.sum(m, axis=0, keepdims=True)
        else:
            sum_acc[...] += jnp.sum(fl * ign, axis=0, keepdims=True)
            cnt_acc[...] += jnp.sum(ign, axis=0, keepdims=True)
    else:
        if has_tail:
            @pl.when(i != last)
            def _():
                sum_acc[...] += jnp.sum(fl, axis=0, keepdims=True)

            @pl.when(i == last)
            def _():
                sum_acc[...] += jnp.sum(fl * _pad_mask(), axis=0, keepdims=True)
        else:
            sum_acc[...] += jnp.sum(fl, axis=0, keepdims=True)

    @pl.when(i == last)
    def _():
        total = jnp.sum(sum_acc[...], axis=1, keepdims=True)          # (1,1)
        if use_ignore:
            count = jnp.sum(cnt_acc[...], axis=1, keepdims=True)      # (1,1)
            o_ref[...] = total / count   # count==0 -> NaN, like torch.mean([])
        else:
            o_ref[...] = total * jnp.float32(1.0 / n_valid)


def _elem_kernel(x_ref, t_ref, o_ref, *, alpha, gamma, logits):
    x = x_ref[...].astype(jnp.float32)
    t = t_ref[...].astype(jnp.float32)
    o_ref[...] = _focal_elementwise(x, t, alpha, gamma, logits).astype(o_ref.dtype)


def focal_loss(inputs, targets, *, alpha=1.0, gamma=2.0, logits=False,
               reduce=True, ignored_label_idx=None, tm=2048):
    """Pallas TPU implementation of FocalLoss.forward."""
    orig_shape = inputs.shape
    x = inputs.reshape(-1)          # no wrapper-side dtype cast: cast in-kernel
    t = targets.reshape(-1)
    n = x.shape[0]

    rows = pl.cdiv(n, LANES)
    rows16 = ((rows + 15) // 16) * 16            # sublane-pack safe (f32/bf16)
    tm_eff = max(16, (min(tm, rows16) // 16) * 16)
    rows_padded = ((rows16 + tm_eff - 1) // tm_eff) * tm_eff
    pad = rows_padded * LANES - n
    has_tail = pad != 0

    # pad tail (masked inside the kernel on the last grid step only)
    x2 = (jnp.pad(x, (0, pad), constant_values=0.5) if pad else x).reshape(
        rows_padded, LANES)
    t2 = (jnp.pad(t, (0, pad), constant_values=0.0) if pad else t).reshape(
        rows_padded, LANES)
    grid = (rows_padded // tm_eff,)

    if reduce:
        use_ignore = bool(ignored_label_idx)   # truthy check, matches PyTorch
        kern = functools.partial(
            _reduce_kernel, alpha=alpha, gamma=gamma, logits=logits,
            ignored_label_idx=(ignored_label_idx if use_ignore else 0),
            n_valid=n, tm=tm_eff, has_tail=has_tail, use_ignore=use_ignore)
        out = pl.pallas_call(
            kern,
            out_shape=jax.ShapeDtypeStruct((1, 1), jnp.float32),
            grid_spec=pltpu.PrefetchScalarGridSpec(
                num_scalar_prefetch=0,
                grid=grid,
                in_specs=[pl.BlockSpec((tm_eff, LANES), lambda i: (i, 0)),
                          pl.BlockSpec((tm_eff, LANES), lambda i: (i, 0))],
                out_specs=pl.BlockSpec((1, 1), lambda i: (0, 0)),
                scratch_shapes=[pltpu.VMEM((1, LANES), jnp.float32),
                                pltpu.VMEM((1, LANES), jnp.float32)]),
            compiler_params=pltpu.CompilerParams(
                dimension_semantics=("arbitrary",)),
        )(x2, t2)
        return out[0, 0]
    else:
        if ignored_label_idx:
            # TODO(synk): boolean-mask indexing F_loss[targets != idx] yields a
            # data-dependent output shape; no clean static-shape Pallas equivalent.
            raise NotImplementedError(
                "reduce=False with ignored_label_idx is data-dependent-shaped")
        kern = functools.partial(_elem_kernel, alpha=alpha, gamma=gamma,
                                 logits=logits)
        out = pl.pallas_call(
            kern,
            out_shape=jax.ShapeDtypeStruct((rows_padded, LANES), inputs.dtype),
            grid_spec=pltpu.PrefetchScalarGridSpec(
                num_scalar_prefetch=0,
                grid=grid,
                in_specs=[pl.BlockSpec((tm_eff, LANES), lambda i: (i, 0)),
                          pl.BlockSpec((tm_eff, LANES), lambda i: (i, 0))],
                out_specs=pl.BlockSpec((tm_eff, LANES), lambda i: (i, 0))),
            compiler_params=pltpu.CompilerParams(
                dimension_semantics=("parallel",)),
        )(x2, t2)
        if pad:
            return out.reshape(-1)[:n].reshape(orig_shape)
        return out.reshape(orig_shape)


def _focal_loss_ref(inputs, targets, alpha=1.0, gamma=2.0, logits=False,
                    reduce=True):
    x = inputs.astype(jnp.float32)
    t = targets.astype(jnp.float32)
    if logits:
        bce = jnp.maximum(x, 0.0) - x * t + jnp.log1p(jnp.exp(-jnp.abs(x)))
    else:
        bce = -(t * jnp.maximum(jnp.log(x), -100.0)
                + (1.0 - t) * jnp.maximum(jnp.log1p(-x), -100.0))
    pt = jnp.exp(-bce)
    fl = alpha * (1.0 - pt) ** gamma * bce
    return jnp.mean(fl) if reduce else fl


if __name__ == "__main__":
    alpha, gamma = 1.0, 2.0

    key = jax.random.PRNGKey(0)
    k1, k2 = jax.random.split(key)
    # inputs are probabilities (module default logits=False)
    inputs = jax.nn.sigmoid(jax.random.normal(k1, (4, 500), dtype=jnp.float32))
    targets = jax.random.bernoulli(k2, 0.3, (4, 500)).astype(jnp.float32)

    # reduce=True path (scalar mean focal loss)
    loss = focal_loss(inputs, targets, alpha=alpha, gamma=gamma,
                      logits=False, reduce=True)
    loss = jax.block_until_ready(loss)
    ref = _focal_loss_ref(inputs, targets, alpha, gamma, False, True)
    assert jnp.allclose(loss, ref, rtol=1e-4, atol=1e-5), (loss, ref)

    # reduce=False path (elementwise focal loss, same shape/dtype as inputs)
    fl = focal_loss(inputs, targets, alpha=alpha, gamma=gamma,
                    logits=False, reduce=False)
    fl = jax.block_until_ready(fl)
    ref_fl = _focal_loss_ref(inputs, targets, alpha, gamma, False, False)
    assert fl.shape == inputs.shape
    assert jnp.allclose(fl, ref_fl, rtol=1e-4, atol=1e-5)

    # logits=True path (inputs are raw logits)
    logit_in = jax.random.normal(k1, (4, 500), dtype=jnp.float32)
    loss_lg = focal_loss(logit_in, targets, alpha=alpha, gamma=gamma,
                         logits=True, reduce=True)
    loss_lg = jax.block_until_ready(loss_lg)
    ref_lg = _focal_loss_ref(logit_in, targets, alpha, gamma, True, True)
    assert jnp.allclose(loss_lg, ref_lg, rtol=1e-4, atol=1e-5), (loss_lg, ref_lg)

    # ignored_label_idx path (mean over targets != 1)
    loss_ig = focal_loss(inputs, targets, alpha=alpha, gamma=gamma,
                         logits=False, reduce=True, ignored_label_idx=1)
    loss_ig = jax.block_until_ready(loss_ig)
    keep = (targets != 1.0).astype(jnp.float32)
    ref_ig = jnp.sum(ref_fl * keep) / jnp.sum(keep)
    assert jnp.allclose(loss_ig, ref_ig, rtol=1e-4, atol=1e-5), (loss_ig, ref_ig)

    print("KERNEL_OK")
</pallas_src>

<mosaic_0001>
module attributes {stable_mosaic.version = 11 : i64} {
  func.func @_reduce_kernel(%arg0: i32, %arg1: memref<16x128xf32, #tpu.memory_space<vmem>>, %arg2: memref<16x128xf32, #tpu.memory_space<vmem>>, %arg3: memref<1x1xf32, #tpu.memory_space<vmem>>, %arg4: memref<1x128xf32, #tpu.memory_space<vmem>>, %arg5: memref<1x128xf32, #tpu.memory_space<vmem>>) attributes {dimension_semantics = [#tpu.dimension_semantics<arbitrary>], iteration_bounds = array<i64: 1>, scalar_prefetch = 0 : i64, scratch_operands = 2 : i64, tpu.core_type = #tpu.core_type<tc>, window_params = [{transform_indices = @transform_0, window_bounds = array<i64: 16, 128>}, {transform_indices = @transform_1, window_bounds = array<i64: 16, 128>}, {pipeline_mode = #tpu.pipeline_mode<synchronous>, transform_indices = @transform_2, window_bounds = array<i64: 1, 1>}]} {
    %c0_i32 = arith.constant 0 : i32
    %0 = arith.cmpi eq, %arg0, %c0_i32 : i32
    %1 = arith.extui %0 : i1 to i32
    %c0_i32_0 = arith.constant 0 : i32
    %2 = arith.cmpi ne, %1, %c0_i32_0 : i32
    scf.if %2 {
      %cst_17 = arith.constant 0.000000e+00 : f32
      %38 = vector.broadcast %cst_17 : f32 to vector<1x128xf32>
      %c0_18 = arith.constant 0 : index
      %c0_19 = arith.constant 0 : index
      %39 = vector.load %arg4[%c0_18, %c0_19] : memref<1x128xf32, #tpu.memory_space<vmem>>, vector<1x128xf32>
      tpu.vector_store %arg4[%c0_18, %c0_19], %38 {strides = array<i32>} : memref<1x128xf32, #tpu.memory_space<vmem>>, vector<1x128xf32>,
      %cst_20 = arith.constant 0.000000e+00 : f32
      %40 = vector.broadcast %cst_20 : f32 to vector<1x128xf32>
      %c0_21 = arith.constant 0 : index
      %c0_22 = arith.constant 0 : index
      %41 = vector.load %arg5[%c0_21, %c0_22] : memref<1x128xf32, #tpu.memory_space<vmem>>, vector<1x128xf32>
      tpu.vector_store %arg5[%c0_21, %c0_22], %40 {strides = array<i32>} : memref<1x128xf32, #tpu.memory_space<vmem>>, vector<1x128xf32>,
    } else {
    }
    %c0 = arith.constant 0 : index
    %c0_1 = arith.constant 0 : index
    %3 = vector.load %arg1[%c0, %c0_1] : memref<16x128xf32, #tpu.memory_space<vmem>>, vector<16x128xf32>
    %c0_2 = arith.constant 0 : index
    %c0_3 = arith.constant 0 : index
    %4 = vector.load %arg2[%c0_2, %c0_3] : memref<16x128xf32, #tpu.memory_space<vmem>>, vector<16x128xf32>
    %5 = math.log %3 : vector<16x128xf32>
    %cst = arith.constant -1.000000e+02 : f32
    %6 = vector.broadcast %cst : f32 to vector<16x128xf32>
    %7 = arith.maximumf %5, %6 : vector<16x128xf32>
    %8 = arith.mulf %4, %7 : vector<16x128xf32>
    %cst_4 = arith.constant 1.000000e+00 : f32
    %9 = vector.broadcast %cst_4 : f32 to vector<16x128xf32>
    %10 = arith.subf %9, %4 : vector<16x128xf32>
    %cst_5 = arith.constant 0.000000e+00 : f32
    %11 = vector.broadcast %cst_5 : f32 to vector<16x128xf32>
    %12 = arith.subf %11, %3 : vector<16x128xf32>
    %13 = math.log1p %12 : vector<16x128xf32>
    %cst_6 = arith.constant -1.000000e+02 : f32
    %14 = vector.broadcast %cst_6 : f32 to vector<16x128xf32>
    %15 = arith.maximumf %13, %14 : vector<16x128xf32>
    %16 = arith.mulf %10, %15 : vector<16x128xf32>
    %17 = arith.addf %8, %16 : vector<16x128xf32>
    %cst_7 = arith.constant 0.000000e+00 : f32
    %18 = vector.broadcast %cst_7 : f32 to vector<16x128xf32>
    %19 = arith.subf %18, %17 : vector<16x128xf32>
    %cst_8 = arith.constant 0.000000e+00 : f32
    %20 = vector.broadcast %cst_8 : f32 to vector<16x128xf32>
    %21 = arith.subf %20, %19 : vector<16x128xf32>
    %22 = math.exp %21 : vector<16x128xf32>
    %cst_9 = arith.constant 1.000000e+00 : f32
    %23 = vector.broadcast %cst_9 : f32 to vector<16x128xf32>
    %24 = arith.subf %23, %22 : vector<16x128xf32>
    %25 = arith.mulf %24, %24 : vector<16x128xf32>
    %cst_10 = arith.constant 1.000000e+00 : f32
    %26 = vector.broadcast %cst_10 : f32 to vector<16x128xf32>
    %27 = arith.mulf %26, %25 : vector<16x128xf32>
    %28 = arith.mulf %27, %19 : vector<16x128xf32>
    %c0_i32_11 = arith.constant 0 : i32
    %29 = arith.cmpi ne, %arg0, %c0_i32_11 : i32
    %30 = arith.extui %29 : i1 to i32
    %c0_i32_12 = arith.constant 0 : i32
    %31 = arith.cmpi ne, %30, %c0_i32_12 : i32
    scf.if %31 {
      %c0_17 = arith.constant 0 : index
      %c0_18 = arith.constant 0 : index
      %38 = vector.load %arg4[%c0_17, %c0_18] : memref<1x128xf32, #tpu.memory_space<vmem>>, vector<1x128xf32>
      %cst_19 = arith.constant dense<0.000000e+00> : vector<128xf32>
      %39 = vector.multi_reduction <add>, %28, %cst_19 [0] : vector<16x128xf32> to vector<128xf32>
      %40 = vector.shape_cast %39 : vector<128xf32> to vector<1x128xf32>
      %41 = arith.addf %38, %40 : vector<1x128xf32>
      %c0_20 = arith.constant 0 : index
      %c0_21 = arith.constant 0 : index
      %42 = vector.load %arg4[%c0_20, %c0_21] : memref<1x128xf32, #tpu.memory_space<vmem>>, vector<1x128xf32>
      tpu.vector_store %arg4[%c0_20, %c0_21], %41 {strides = array<i32>} : memref<1x128xf32, #tpu.memory_space<vmem>>, vector<1x128xf32>,
    } else {
    }
    %c0_i32_13 = arith.constant 0 : i32
    %32 = arith.cmpi eq, %arg0, %c0_i32_13 : i32
    %33 = arith.extui %32 : i1 to i32
    %c0_i32_14 = arith.constant 0 : i32
    %34 = arith.cmpi ne, %33, %c0_i32_14 : i32
    scf.if %34 {
      %c0_17 = arith.constant 0 : index
      %c0_18 = arith.constant 0 : index
      %38 = vector.load %arg4[%c0_17, %c0_18] : memref<1x128xf32, #tpu.memory_space<vmem>>, vector<1x128xf32>
      %39 = tpu.iota {dimensions = array<i32: 0>} : vector<16x128xi32>
      %40 = tpu.iota {dimensions = array<i32: 1>} : vector<16x128xi32>
      %c16_i32 = arith.constant 16 : i32
      %41 = arith.muli %arg0, %c16_i32 : i32
      %42 = vector.broadcast %41 : i32 to vector<16x128xi32>
      %43 = arith.addi %42, %39 : vector<16x128xi32>
      %c128_i32 = arith.constant 128 : i32
      %44 = vector.broadcast %c128_i32 : i32 to vector<16x128xi32>
      %45 = arith.muli %43, %44 : vector<16x128xi32>
      %46 = arith.addi %45, %40 : vector<16x128xi32>
      %c2000_i32 = arith.constant 2000 : i32
      %47 = vector.broadcast %c2000_i32 : i32 to vector<16x128xi32>
      %48 = arith.cmpi slt, %46, %47 : vector<16x128xi32>
      %49 = arith.extui %48 : vector<16x128xi1> to vector<16x128xi32>
      %50 = arith.sitofp %49 : vector<16x128xi32> to vector<16x128xf32>
      %51 = arith.mulf %28, %50 : vector<16x128xf32>
      %cst_19 = arith.constant dense<0.000000e+00> : vector<128xf32>
      %52 = vector.multi_reduction <add>, %51, %cst_19 [0] : vector<16x128xf32> to vector<128xf32>
      %53 = vector.shape_cast %52 : vector<128xf32> to vector<1x128xf32>
      %54 = arith.addf %38, %53 : vector<1x128xf32>
      %c0_20 = arith.constant 0 : index
      %c0_21 = arith.constant 0 : index
      %55 = vector.load %arg4[%c0_20, %c0_21] : memref<1x128xf32, #tpu.memory_space<vmem>>, vector<1x128xf32>
      tpu.vector_store %arg4[%c0_20, %c0_21], %54 {strides = array<i32>} : memref<1x128xf32, #tpu.memory_space<vmem>>, vector<1x128xf32>,
    } else {
    }
    %c0_i32_15 = arith.constant 0 : i32
    %35 = arith.cmpi eq, %arg0, %c0_i32_15 : i32
    %36 = arith.extui %35 : i1 to i32
    %c0_i32_16 = arith.constant 0 : i32
    %37 = arith.cmpi ne, %36, %c0_i32_16 : i32
    scf.if %37 {
      %c0_17 = arith.constant 0 : index
      %c0_18 = arith.constant 0 : index
      %38 = vector.load %arg4[%c0_17, %c0_18] : memref<1x128xf32, #tpu.memory_space<vmem>>, vector<1x128xf32>
      %cst_19 = arith.constant dense<0.000000e+00> : vector<1xf32>
      %39 = vector.multi_reduction <add>, %38, %cst_19 [1] : vector<1x128xf32> to vector<1xf32>
      %40 = vector.shape_cast %39 : vector<1xf32> to vector<1x1xf32>
      %cst_20 = arith.constant 5.000000e-04 : f32
      %41 = vector.broadcast %cst_20 : f32 to vector<1x1xf32>
      %42 = arith.mulf %40, %41 : vector<1x1xf32>
      %c0_21 = arith.constant 0 : index
      %c0_22 = arith.constant 0 : index
      %43 = vector.load %arg3[%c0_21, %c0_22] : memref<1x1xf32, #tpu.memory_space<vmem>>, vector<1x1xf32>
      tpu.vector_store %arg3[%c0_21, %c0_22], %42 {strides = array<i32>} : memref<1x1xf32, #tpu.memory_space<vmem>>, vector<1x1xf32>,
    } else {
    }
    return
  }
  func.func @transform_0(%arg0: i32) -> (i32, i32) {
    %c0_i32 = arith.constant 0 : i32
    %c0_i32_0 = arith.constant 0 : i32
    return %arg0, %c0_i32 : i32, i32
  }
  func.func @transform_1(%arg0: i32) -> (i32, i32) {
    %c0_i32 = arith.constant 0 : i32
    %c0_i32_0 = arith.constant 0 : i32
    return %arg0, %c0_i32 : i32, i32
  }
  func.func @transform_2(%arg0: i32) -> (i32, i32) {
    %c0_i32 = arith.constant 0 : i32
    %c0_i32_0 = arith.constant 0 : i32
    %c0_i32_1 = arith.constant 0 : i32
    return %c0_i32, %c0_i32_0 : i32, i32
  }
}

</mosaic_0001>

<llo_original>
// kernel: tpu_custom_call.1
$region0: #{tpu_custom_call.1}
  #allocation0 [shape = 'u32[]', space=smem, size = 0x4, offset = 0x4, fixed_abs, tag = 'smem constant byte address 0x4 - core index']
  #allocation1 [shape = 'u32[72,128]{1,0:T(1,128)}', space=vmem, size = 0x9000, scoped, tag = 'internal scratch']
  #allocation2 [shape = 'f32[1,128]{1,0:T(1,128)}', space=vmem, size = 0x200, scoped, tag = 'scratch operand']
  #allocation3 [shape = 'f32[1,128]{1,0:T(1,128)}', space=vmem, size = 0x200, scoped, tag = 'scratch operand']
  %s0 = inlined_call_operand.hbm [shape: f32[16,128], index: 0, kind: input, shape index: {}]
  %s1 = inlined_call_operand.hbm [shape: f32[16,128], index: 1, kind: input, shape index: {}]
  %s2 = inlined_call_operand.hbm [shape: f32[1,1], index: 2, kind: output, shape index: {}]
  %s3 = sld [smem:[#allocation0]]
  $region38: #{tpu_custom_call.1} parent=0
    _
  %s5 = ssub.s32 1, %s3
  %s6 = scalar_select 0, %s5, %s3
  $region1: #{tpu_custom_call.1} parent=0
    #allocation4 [shape = 'u8[8192]{0}', space=vmem, size = 0x2000, scoped, tag = 'input window, operand 0, single buffered']
    #allocation5 [shape = 's32[1]{0}', space=sflag, size = 0x4, scoped, tag = 'scoped memory for tpu_custom_call.1']
    #allocation6 [shape = 's32[1]{0}', space=sflag, size = 0x4, scoped, tag = 'scoped memory for tpu_custom_call.1']
    #allocation7 [shape = 'u8[8192]{0}', space=vmem, size = 0x2000, scoped, tag = 'input window, operand 1, single buffered']
    #allocation8 [shape = 's32[1]{0}', space=sflag, size = 0x4, scoped, tag = 'scoped memory for tpu_custom_call.1']
    #allocation9 [shape = 'u8[512]{0}', space=vmem, size = 0x400, scoped, tag = 'output window, operand 0, single buffered']
    %7 = vsyncpa [#allocation5], 0
    %8 = vsyncpa [#allocation8], 0
    %9 = vsyncpa [#allocation6], 0
    // Predicated region
    $region2: #{tpu_custom_call.1} parent=1 // pred_check
      _
    $region3: #{tpu_custom_call.1} parent=1 // pred_check_branch
      %11 = sbr.rel (0) target = $region5
    $region4: #{tpu_custom_call.1} parent=1 // pred_region
      %13 = vsyncadd [#allocation5], 0
      %s14 = sshll.u32 %s0, 4
      %s15 = int_to_ptr.hbm [resolvable:$true] %s14
      %s16 = sshll.u32 [#allocation4], 4
      %s17 = int_to_ptr.vmem [resolvable:$true] %s16
      %22 = dma.hbm_to_vmem [thread:$0]  %s15, 256, %s17, [#allocation5], 128, 128, 8
    $region5: #{tpu_custom_call.1} parent=1 // pred_fallthru
      _
    // Predicated region
    $region6: #{tpu_custom_call.1} parent=1 // pred_check
      _
    $region7: #{tpu_custom_call.1} parent=1 // pred_check_branch
      %24 = sbr.rel (0) target = $region9
    $region8: #{tpu_custom_call.1} parent=1 // pred_region
      %26 = vsyncadd [#allocation8], 0
      %s27 = sshll.u32 %s1, 4
      %s28 = int_to_ptr.hbm [resolvable:$true] %s27
      %s29 = sshll.u32 [#allocation7], 4
      %s30 = int_to_ptr.vmem [resolvable:$true] %s29
      %35 = dma.hbm_to_vmem [thread:$0]  %s28, 256, %s30, [#allocation8], 128, 128, 8
    $region9: #{tpu_custom_call.1} parent=1 // pred_fallthru
      _
    // Predicated region
    $region10: #{tpu_custom_call.1} parent=1 // pred_check
      _
    $region11: #{tpu_custom_call.1} parent=1 // pred_check_branch
      %37 = sbr.rel (0) target = $region13
    $region12: #{tpu_custom_call.1} parent=1 // pred_region
      %39 = dma.done [#allocation5], 256
    $region13: #{tpu_custom_call.1} parent=1 // pred_fallthru
      _
    // Predicated region
    $region14: #{tpu_custom_call.1} parent=1 // pred_check
      _
    $region15: #{tpu_custom_call.1} parent=1 // pred_check_branch
      %41 = sbr.rel (0) target = $region17
    $region16: #{tpu_custom_call.1} parent=1 // pred_region
      %43 = dma.done [#allocation8], 256
    $region17: #{tpu_custom_call.1} parent=1 // pred_fallthru
      _
    %p44 = scmp.eq.s32.totalorder 0, 0
    // Predicated region
    $region18: #{tpu_custom_call.1} parent=1 // pred_check
      %p45 = pneg %p44
    $region19: #{tpu_custom_call.1} parent=1 // pred_check_branch
      %47 = sbr.rel (%p45) target = $region21
    $region20: #{tpu_custom_call.1} parent=1 // pred_region
      %48 = vst [vmem:[#allocation2] sm:$0x1] 0.0
      %49 = vst [vmem:[#allocation3] sm:$0x1] 0.0
    $region21: #{tpu_custom_call.1} parent=1 // pred_fallthru
      _
    %v50 = vld [vmem:[#allocation4] sm:$0xff]
    %v51 = vld [vmem:[#allocation4 + $0x8] sm:$0xff]
    %v52 = vld [vmem:[#allocation7] sm:$0xff]
    %v53 = vld [vmem:[#allocation7 + $0x8] sm:$0xff]
    %v54 = vlog2.pop %v50
    %v55 = vmul.f32 %v54, 0.6931472
    %v56 = vlog2.pop %v51
    %v57 = vmul.f32 %v56, 0.6931472
    %v58 = vmax.f32 %v55, -100.0
    %v59 = vmax.f32 %v57, -100.0
    %v60 = vmul.f32 %v52, %v58
    %v61 = vmul.f32 %v53, %v59
    %v62 = vsub.f32 1.0, %v52
    %v63 = vsub.f32 1.0, %v53
    %v64 = vsub.f32 0.0, %v50
    %v65 = vsub.f32 0.0, %v51
    %v66 = vadd.f32 %v64, 1.0
    %v67 = vlog2.pop %v66
    %v68 = vmul.f32 %v67, 0.6931472
    %v69 = vmul.f32 -0.5, %v64
    %v70 = vadd.f32 %v69, 1.0
    %v71 = vmul.f32 %v70, %v64
    %v72 = vand.u32 2147483647, %v64
    %vm73 = vcmp.lt.f32.partialorder %v72, 0.0004427343
    %v74 = vsel %vm73, %v71, %v68
    %v75 = vadd.f32 %v65, 1.0
    %v76 = vlog2.pop %v75
    %v77 = vmul.f32 %v76, 0.6931472
    %v78 = vmul.f32 -0.5, %v65
    %v79 = vadd.f32 %v78, 1.0
    %v80 = vmul.f32 %v79, %v65
    %v81 = vand.u32 2147483647, %v65
    %vm82 = vcmp.lt.f32.partialorder %v81, 0.0004427343
    %v83 = vsel %vm82, %v80, %v77
    %v84 = vmax.f32 %v74, -100.0
    %v85 = vmax.f32 %v83, -100.0
    %v86 = vmul.f32 %v62, %v84
    %v87 = vmul.f32 %v63, %v85
    %v88 = vadd.f32 %v60, %v86
    %v89 = vadd.f32 %v61, %v87
    %v90 = vsub.f32 0.0, %v88
    %v91 = vsub.f32 0.0, %v89
    %v92 = vsub.f32 0.0, %v90
    %v93 = vsub.f32 0.0, %v91
    %v94 = vmul.f32 %v92, 1.442695
    %v95 = vpow.pop %v94
    %v96 = vmul.f32 %v93, 1.442695
    %v97 = vpow.pop %v96
    %v98 = vsub.f32 1.0, %v95
    %v99 = vsub.f32 1.0, %v97
    %v100 = vmul.f32 %v98, %v98
    %v101 = vmul.f32 %v99, %v99
    %v102 = vmul.f32 %v100, %v90
    %v103 = vmul.f32 %v101, %v91
    %p104 = scmp.ne.s32.totalorder 0, 0
    // Predicated region
    $region22: #{tpu_custom_call.1} parent=1 // pred_check
      %p105 = pneg %p104
    $region23: #{tpu_custom_call.1} parent=1 // pred_check_branch
      %107 = sbr.rel (%p105) target = $region25
    $region24: #{tpu_custom_call.1} parent=1 // pred_region
      %v108 = vld [vmem:[#allocation2] sm:$0x1]
      %v109 = vadd.f32 %v102, %v103
      %v110 = vrot.slane %v109, 4
      %v111 = vadd.f32 %v109, %v110
      %v112 = vrot.slane %v111, 2
      %v113 = vadd.f32 %v111, %v112
      %v114 = vrot.slane %v113, 1
      %v115 = vadd.f32 %v113, %v114
      %v116 = vadd.f32 %v108, %v115
      %117 = vst [vmem:[#allocation2] sm:$0x1] %v116
    $region25: #{tpu_custom_call.1} parent=1 // pred_fallthru
      _
    // Predicated region
    $region26: #{tpu_custom_call.1} parent=1 // pred_check
      %p118 = pneg %p44
    $region27: #{tpu_custom_call.1} parent=1 // pred_check_branch
      %120 = sbr.rel (%p118) target = $region29
    $region28: #{tpu_custom_call.1} parent=1 // pred_region
      %v121 = vld [vmem:[#allocation2] sm:$0x1]
      %v122 = vlaneseq
      %v123 = vshrl.u32 %v122, 7
      %v124 = vadd.s32 %v123, 8
      %v125 = vlaneseq
      %v126 = vand.u32 %v125, 127
      %s127 = smul.u32 0, 16
      %v128 = vstv %s127
      %v129 = vadd.s32 %v128, %v123
      %v130 = vadd.s32 %v128, %v124
      %v131 = vmul.u32 %v129, 128
      %v132 = vmul.u32 %v130, 128
      %v133 = vadd.s32 %v131, %v126
      %v134 = vadd.s32 %v132, %v126
      %vm135 = vcmp.lt.s32.totalorder %v133, 2000
      %vm136 = vcmp.lt.s32.totalorder %v134, 2000
      %v137 = vsel %vm135, 1, 0
      %v138 = vsel %vm136, 1, 0
      %v139 = vcvt.s32.f32 %v137
      %v140 = vcvt.s32.f32 %v138
      %v141 = vmul.f32 %v102, %v139
      %v142 = vmul.f32 %v103, %v140
      %v143 = vadd.f32 %v141, %v142
      %v144 = vrot.slane %v143, 4
      %v145 = vadd.f32 %v143, %v144
      %v146 = vrot.slane %v145, 2
      %v147 = vadd.f32 %v145, %v146
      %v148 = vrot.slane %v147, 1
      %v149 = vadd.f32 %v147, %v148
      %v150 = vadd.f32 %v121, %v149
      %151 = vst [vmem:[#allocation2] sm:$0x1] %v150
      %v152 = vld [vmem:[#allocation2] sm:$0x1]
      %vm153 = vcmask 1040384
      %v154 = vsel %vm153, %v152, 0.0
      %155 = vadd.xlane.f32.xlu0 %v154
      %v156 = vpop.xlane.xlu0 %155
      %v157 = vmul.f32 %v156, 0.0005
      %vm158 = vcmask 0
      %159 = vst.msk [vmem:[#allocation9] sm:$0x1] %vm158, %v157
    $region29: #{tpu_custom_call.1} parent=1 // pred_fallthru
      _
    // Predicated region
    $region30: #{tpu_custom_call.1} parent=1 // pred_check
      _
    $region31: #{tpu_custom_call.1} parent=1 // pred_check_branch
      %161 = sbr.rel (0) target = $region33
    $region32: #{tpu_custom_call.1} parent=1 // pred_region
      %163 = vsyncadd [#allocation6], 0
      %s165 = sshll.u32 [#allocation9], 4
      %s166 = int_to_ptr.vmem [resolvable:$true] %s165
      %s167 = sshll.u32 %s2, 4
      %s168 = int_to_ptr.hbm [resolvable:$true] %s167
      %170 = dma.vmem_to_hbm [thread:$0]  %s166, 16, %s168, [#allocation6]
    $region33: #{tpu_custom_call.1} parent=1 // pred_fallthru
      _
    // Predicated region
    $region34: #{tpu_custom_call.1} parent=1 // pred_check
      _
    $region35: #{tpu_custom_call.1} parent=1 // pred_check_branch
      %172 = sbr.rel (0) target = $region37
    $region36: #{tpu_custom_call.1} parent=1 // pred_region
      %174 = dma.done [#allocation6], 16
    $region37: #{tpu_custom_call.1} parent=1 // pred_fallthru
      _
    %175 = vsyncpa [#allocation5], 1
    %176 = vsyncpa [#allocation8], 1
    %177 = vsyncpa [#allocation6], 1

</llo_original>
